<compile_context>
chip_gen: v7x
topology: tpu7x:2x2x1
jax: 0.10.0
libtpu: 0.0.40
codegen_flags: <defaults>
</compile_context>

<pallas_src>
import functools

import jax
import jax.numpy as jnp
from jax.experimental import pallas as pl
from jax.experimental.pallas import tpu as pltpu

LANES = 128                 # vreg lane width (last dim of every block)
DEFAULT_BLOCK_ROWS = 8192   # ~4 MiB f32 per input block per buffer


def _round_up(x, m):
    return ((x + m - 1) // m) * m


def _focal_elements(x, t, *, alpha, gamma, binary_targets, approx_recip):
    """Element-wise focal loss on f32 tiles (shared by both kernels)."""
    x = x.astype(jnp.float32)
    t = t.astype(jnp.float32)

    # Numerically stable BCE-with-logits (reduction='none'):
    #   bce = max(x, 0) - x*t + log(1 + exp(-|x|))
    e = jnp.exp(-jnp.abs(x))                           # EUP #1 (reused below)
    bce = jnp.maximum(x, 0.0) - x * t + jnp.log1p(e)   # EUP #2

    if binary_targets:
        # pt without a second exp: p = sigmoid(x), q = 1-p, cancellation-free.
        denom = 1.0 + e
        if approx_recip:
            # EUP vrcp: enable on v7x where the EUP slot binds; lower precision.
            r = pl.reciprocal(denom, approx=True)
        else:
            r = 1.0 / denom
        er = e * r
        p = jnp.where(x >= 0.0, r, er)             # sigmoid(x)
        q = jnp.where(x >= 0.0, er, r)             # 1 - sigmoid(x)
        one_minus_pt = jnp.where(t >= 0.5, q, p)   # 1 - exp(-bce) for t in {0,1}
    else:
        # Generic (soft-target) path: matches torch.exp(-bce) exactly.
        one_minus_pt = 1.0 - jnp.exp(-bce)

    g = float(gamma)
    if g.is_integer() and g >= 0:
        gi = int(g)
        if gi == 0:
            mod = jnp.ones_like(bce)
        else:
            mod = one_minus_pt
            for _ in range(gi - 1):
                mod = mod * one_minus_pt
    else:
        mod = jnp.power(jnp.maximum(one_minus_pt, 0.0), g)

    focal = mod * bce
    if float(alpha) != 1.0:
        focal = float(alpha) * focal
    return focal


def _focal_sum_kernel(x_ref, t_ref, psum_ref, *, alpha, gamma, binary_targets,
                      approx_recip, valid_rows):
    focal = _focal_elements(
        x_ref[...], t_ref[...], alpha=alpha, gamma=gamma,
        binary_targets=binary_targets, approx_recip=approx_recip)
    bm, lanes = focal.shape
    if valid_rows is not None:
        # Tail mask for the last (overrunning) block: OOB rows read garbage,
        # which may be NaN/Inf -> zero them before the reduce (2 cheap VPU ops).
        row_ids = (jax.lax.broadcasted_iota(jnp.int32, (bm, lanes), 0)
                   + pl.program_id(0) * bm)
        focal = jnp.where(row_ids < valid_rows, focal, 0.0)
    # Reduce the block to one (8, 128) vreg of partial sums (pure VALU tree,
    # no per-step XLU cross-lane reduce, no scalar SMEM RMW).
    partial = focal.reshape(bm // 8, 8, lanes).sum(axis=0)
    psum_ref[...] = partial[None, :, :]


def _focal_map_kernel(x_ref, t_ref, o_ref, *, alpha, gamma, binary_targets,
                      approx_recip):
    focal = _focal_elements(
        x_ref[...], t_ref[...], alpha=alpha, gamma=gamma,
        binary_targets=binary_targets, approx_recip=approx_recip)
    o_ref[...] = focal.astype(o_ref.dtype)   # store in transport dtype


def focal_loss(inputs, targets, alpha=1.0, gamma=2.0, reduction="mean", *,
               binary_targets=True, approx_reciprocal=False,
               block_rows=DEFAULT_BLOCK_ROWS):
    """Pallas TPU focal loss.

    inputs:  logits, e.g. [B, 1, H, W] (f32/bf16/f16 — transported as-is).
    targets: ground-truth masks, same shape (float / bool / uint8 accepted).
    reduction: 'mean' | 'sum' | 'none' (matches the PyTorch module).
    binary_targets: assume targets in {0,1} (module's use case) -> pt derived
                    from the shared exp; set False for soft targets.
    """
    assert inputs.shape == targets.shape
    n = int(inputs.size)
    assert n > 0

    x = inputs.reshape(-1)
    t = targets.reshape(-1)
    if t.dtype == jnp.bool_:
        # 1-byte transport kept; Mosaic i1 inputs are awkward.
        t = t.astype(jnp.uint8)

    # Sublane alignment for the (rows, 128) slab: 8 for >=32-bit operands,
    # 32 if any streamed operand is sub-32-bit.
    min_item = min(jnp.dtype(x.dtype).itemsize, jnp.dtype(t.dtype).itemsize)
    align = 8 if min_item >= 4 else 32

    rows = _round_up(pl.cdiv(n, LANES), align)
    pad = rows * LANES - n
    if pad:
        # Only triggers when n isn't already a multiple of align*128 (rare for
        # image masks).  Dtype-aware neutral pad: big-negative-but-finite logit
        # and zero target -> bce = 0, (1-pt) = 0 -> focal contribution exactly 0.
        # TODO(synk): for ragged n this is still one flat-copy pass; a split
        # main-slab + tiny-tail path would remove it entirely.
        if jnp.issubdtype(x.dtype, jnp.floating):
            neg = float(jnp.finfo(x.dtype).min) / 2
        else:
            neg = float(jnp.iinfo(x.dtype).min)
        x = jnp.pad(x, (0, pad), constant_values=neg)
        t = jnp.pad(t, (0, pad))
    x = x.reshape(rows, LANES)
    t = t.reshape(rows, LANES)

    # Block height: as large as `block_rows`, but if the whole problem fits in
    # <= 2 blocks still split it in two so the "parallel" axis can shard over
    # both v7x TensorCores.  bm never exceeds `rows`.
    bm_cap = _round_up(block_rows, align)
    if rows <= bm_cap:
        bm = min(_round_up(pl.cdiv(rows, 2), align), rows)
    else:
        bm = bm_cap
    grid_n = pl.cdiv(rows, bm)
    # In-kernel tail mask only needed when the last block overruns the array.
    valid_rows = rows if (rows % bm) else None

    common = dict(alpha=float(alpha), gamma=float(gamma),
                  binary_targets=bool(binary_targets),
                  approx_recip=bool(approx_reciprocal))
    in_specs = [
        pl.BlockSpec((bm, LANES), lambda i: (i, 0)),
        pl.BlockSpec((bm, LANES), lambda i: (i, 0)),
    ]
    in_block_bytes = bm * LANES * (jnp.dtype(x.dtype).itemsize
                                   + jnp.dtype(t.dtype).itemsize)
    in_bytes_total = rows * LANES * (jnp.dtype(x.dtype).itemsize
                                     + jnp.dtype(t.dtype).itemsize)

    def _params(out_block_bytes):
        # Explicit scoped-VMEM budget: 2x (double buffer) per streamed operand
        # plus headroom.  Keeps bm=8192 legal on v5e's 16 MiB default, well
        # under v7x's 64 MiB physical.
        per_step = 2 * (in_block_bytes + out_block_bytes)
        vmem = min(64 << 20, max(16 << 20, per_step + (4 << 20)))
        return pltpu.CompilerParams(dimension_semantics=("parallel",),
                                    vmem_limit_bytes=int(vmem))

    def _cost(out_bytes_total):
        return pl.CostEstimate(
            flops=int(18 * rows * LANES),
            transcendentals=int((2 if binary_targets else 3) * rows * LANES),
            bytes_accessed=int(in_bytes_total + out_bytes_total))

    if reduction in ("mean", "sum"):
        kernel = functools.partial(_focal_sum_kernel, valid_rows=valid_rows,
                                   **common)
        partial_sums = pl.pallas_call(
            kernel,
            out_shape=jax.ShapeDtypeStruct((grid_n, 8, LANES), jnp.float32),
            grid_spec=pltpu.PrefetchScalarGridSpec(
                num_scalar_prefetch=0,
                grid=(grid_n,),
                in_specs=in_specs,
                out_specs=pl.BlockSpec((1, 8, LANES), lambda i: (i, 0, 0)),
            ),
            compiler_params=_params(8 * LANES * 4),
            cost_estimate=_cost(grid_n * 8 * LANES * 4),
        )(x, t)
        # Tiny final cross-lane reduce (grid_n * 4 KiB) outside the kernel.
        total = jnp.sum(partial_sums)
        if reduction == "mean":
            total = total / jnp.float32(n)
        if jnp.issubdtype(inputs.dtype, jnp.floating):
            total = total.astype(inputs.dtype)
        return total

    elif reduction == "none":
        out_dtype = (inputs.dtype if jnp.issubdtype(inputs.dtype, jnp.floating)
                     else jnp.float32)
        out_item = jnp.dtype(out_dtype).itemsize
        kernel = functools.partial(_focal_map_kernel, **common)
        out = pl.pallas_call(
            kernel,
            out_shape=jax.ShapeDtypeStruct((rows, LANES), out_dtype),
            grid_spec=pltpu.PrefetchScalarGridSpec(
                num_scalar_prefetch=0,
                grid=(grid_n,),
                in_specs=in_specs,
                out_specs=pl.BlockSpec((bm, LANES), lambda i: (i, 0)),
            ),
            compiler_params=_params(bm * LANES * out_item),
            cost_estimate=_cost(rows * LANES * out_item),
        )(x, t)
        out = out.reshape(-1)
        if pad:
            out = out[:n]
        return out.reshape(inputs.shape)

    else:
        raise ValueError(f"unknown reduction: {reduction!r}")


def _reference_focal_loss(inputs, targets, alpha=1.0, gamma=2.0,
                          reduction="mean"):
    """Pure-JAX mirror of the PyTorch module (for correctness checking)."""
    x = inputs.astype(jnp.float32)
    t = targets.astype(jnp.float32)
    bce = jnp.maximum(x, 0.0) - x * t + jnp.log1p(jnp.exp(-jnp.abs(x)))
    pt = jnp.exp(-bce)
    focal = alpha * (1.0 - pt) ** gamma * bce
    if reduction == "mean":
        return jnp.mean(focal)
    if reduction == "sum":
        return jnp.sum(focal)
    return focal


if __name__ == "__main__":
    key = jax.random.PRNGKey(0)
    k1, k2, k3, k4 = jax.random.split(key, 4)

    # Shapes matching the module's [B, 1, H, W] contract.
    B, C, H, W = 2, 1, 16, 16
    logits = jax.random.normal(k1, (B, C, H, W), dtype=jnp.float32) * 2.0
    masks = (jax.random.uniform(k2, (B, C, H, W)) > 0.5).astype(jnp.float32)

    # 'mean' reduction (module default).
    mean_fn = jax.jit(functools.partial(
        focal_loss, alpha=1.0, gamma=2.0, reduction="mean"))
    loss = jax.block_until_ready(mean_fn(logits, masks))
    ref = _reference_focal_loss(logits, masks, reduction="mean")
    assert jnp.allclose(loss, ref, rtol=1e-5, atol=1e-6), (loss, ref)

    # 'sum' reduction.
    sum_fn = jax.jit(functools.partial(focal_loss, reduction="sum"))
    loss_s = jax.block_until_ready(sum_fn(logits, masks))
    ref_s = _reference_focal_loss(logits, masks, reduction="sum")
    assert jnp.allclose(loss_s, ref_s, rtol=1e-5, atol=1e-5), (loss_s, ref_s)

    # 'none' reduction (per-element map, stored in input dtype).
    map_fn = jax.jit(functools.partial(focal_loss, reduction="none"))
    per_elem = jax.block_until_ready(map_fn(logits, masks))
    ref_map = _reference_focal_loss(logits, masks, reduction="none")
    assert per_elem.shape == logits.shape and per_elem.dtype == logits.dtype
    assert jnp.allclose(per_elem, ref_map, rtol=1e-5, atol=1e-6)

    # A size that exercises the multi-block + in-kernel tail-mask path
    # (rows=24, bm=16, grid=2, last block overruns by 8 rows).
    logits2 = jax.random.normal(k3, (2, 1, 32, 48), dtype=jnp.float32) * 2.0
    masks2 = (jax.random.uniform(k4, (2, 1, 32, 48)) > 0.5).astype(jnp.float32)
    loss2 = jax.block_until_ready(mean_fn(logits2, masks2))
    ref2 = _reference_focal_loss(logits2, masks2, reduction="mean")
    assert jnp.allclose(loss2, ref2, rtol=1e-5, atol=1e-6), (loss2, ref2)
    per2 = jax.block_until_ready(map_fn(logits2, masks2))
    ref2_map = _reference_focal_loss(logits2, masks2, reduction="none")
    assert jnp.allclose(per2, ref2_map, rtol=1e-5, atol=1e-6)

    print("KERNEL_OK")
</pallas_src>

<mosaic_0001>
module attributes {stable_mosaic.version = 11 : i64} {
  func.func @_focal_sum_kernel(%arg0: i32, %arg1: memref<8x128xf32, #tpu.memory_space<vmem>>, %arg2: memref<8x128xf32, #tpu.memory_space<vmem>>, %arg3: memref<1x8x128xf32, #tpu.memory_space<vmem>>) attributes {dimension_semantics = [#tpu.dimension_semantics<parallel>], iteration_bounds = array<i64: 1>, scalar_prefetch = 0 : i64, scratch_operands = 0 : i64, tpu.core_type = #tpu.core_type<tc>, window_params = [{transform_indices = @transform_0, window_bounds = array<i64: 8, 128>}, {transform_indices = @transform_1, window_bounds = array<i64: 8, 128>}, {transform_indices = @transform_2, window_bounds = array<i64: 1, 8, 128>}]} {
    %c0 = arith.constant 0 : index
    %c0_0 = arith.constant 0 : index
    %0 = vector.load %arg1[%c0, %c0_0] : memref<8x128xf32, #tpu.memory_space<vmem>>, vector<8x128xf32>
    %c0_1 = arith.constant 0 : index
    %c0_2 = arith.constant 0 : index
    %1 = vector.load %arg2[%c0_1, %c0_2] : memref<8x128xf32, #tpu.memory_space<vmem>>, vector<8x128xf32>
    %2 = math.absf %0 : vector<8x128xf32>
    %cst = arith.constant 0.000000e+00 : f32
    %3 = vector.broadcast %cst : f32 to vector<8x128xf32>
    %4 = arith.subf %3, %2 : vector<8x128xf32>
    %5 = math.exp %4 : vector<8x128xf32>
    %cst_3 = arith.constant 0.000000e+00 : f32
    %6 = vector.broadcast %cst_3 : f32 to vector<8x128xf32>
    %7 = arith.maximumf %0, %6 : vector<8x128xf32>
    %8 = arith.mulf %0, %1 : vector<8x128xf32>
    %9 = arith.subf %7, %8 : vector<8x128xf32>
    %10 = math.log1p %5 : vector<8x128xf32>
    %11 = arith.addf %9, %10 : vector<8x128xf32>
    %cst_4 = arith.constant 1.000000e+00 : f32
    %12 = vector.broadcast %cst_4 : f32 to vector<8x128xf32>
    %13 = arith.addf %12, %5 : vector<8x128xf32>
    %cst_5 = arith.constant 1.000000e+00 : f32
    %14 = vector.broadcast %cst_5 : f32 to vector<8x128xf32>
    %15 = arith.divf %14, %13 : vector<8x128xf32>
    %16 = arith.mulf %5, %15 : vector<8x128xf32>
    %cst_6 = arith.constant 0.000000e+00 : f32
    %17 = vector.broadcast %cst_6 : f32 to vector<8x128xf32>
    %18 = arith.cmpf oge, %0, %17 : vector<8x128xf32>
    %19 = arith.select %18, %15, %16 : vector<8x128xi1>, vector<8x128xf32>
    %cst_7 = arith.constant 0.000000e+00 : f32
    %20 = vector.broadcast %cst_7 : f32 to vector<8x128xf32>
    %21 = arith.cmpf oge, %0, %20 : vector<8x128xf32>
    %22 = arith.select %21, %16, %15 : vector<8x128xi1>, vector<8x128xf32>
    %cst_8 = arith.constant 5.000000e-01 : f32
    %23 = vector.broadcast %cst_8 : f32 to vector<8x128xf32>
    %24 = arith.cmpf oge, %1, %23 : vector<8x128xf32>
    %25 = arith.select %24, %22, %19 : vector<8x128xi1>, vector<8x128xf32>
    %26 = arith.mulf %25, %25 : vector<8x128xf32>
    %27 = arith.mulf %26, %11 : vector<8x128xf32>
    %28 = vector.shape_cast %27 : vector<8x128xf32> to vector<1x8x128xf32>
    %cst_9 = arith.constant dense<0.000000e+00> : vector<8x128xf32>
    %29 = vector.multi_reduction <add>, %28, %cst_9 [0] : vector<1x8x128xf32> to vector<8x128xf32>
    %30 = vector.shape_cast %29 : vector<8x128xf32> to vector<1x8x128xf32>
    %c0_10 = arith.constant 0 : index
    %c0_11 = arith.constant 0 : index
    %c0_12 = arith.constant 0 : index
    %31 = vector.load %arg3[%c0_10, %c0_11, %c0_12] : memref<1x8x128xf32, #tpu.memory_space<vmem>>, vector<1x8x128xf32>
    tpu.vector_store %arg3[%c0_10, %c0_11, %c0_12], %30 {strides = array<i32>} : memref<1x8x128xf32, #tpu.memory_space<vmem>>, vector<1x8x128xf32>,
    return
  }
  func.func @transform_0(%arg0: i32) -> (i32, i32) {
    %c0_i32 = arith.constant 0 : i32
    %c0_i32_0 = arith.constant 0 : i32
    return %arg0, %c0_i32 : i32, i32
  }
  func.func @transform_1(%arg0: i32) -> (i32, i32) {
    %c0_i32 = arith.constant 0 : i32
    %c0_i32_0 = arith.constant 0 : i32
    return %arg0, %c0_i32 : i32, i32
  }
  func.func @transform_2(%arg0: i32) -> (i32, i32, i32) {
    %c0_i32 = arith.constant 0 : i32
    %c0_i32_0 = arith.constant 0 : i32
    %c0_i32_1 = arith.constant 0 : i32
    return %arg0, %c0_i32, %c0_i32_0 : i32, i32, i32
  }
}

</mosaic_0001>

<llo_original>
// kernel: focal_loss.1
$region0: #{focal_loss.1}
  #allocation0 [shape = 'u32[]', space=smem, size = 0x4, offset = 0x4, fixed_abs, tag = 'smem constant byte address 0x4 - core index']
  #allocation1 [shape = 'u32[144,128]{1,0:T(1,128)}', space=vmem, size = 0x12000, scoped, tag = 'internal scratch']
  %s0 = inlined_call_operand.vmem [shape: f32[8,128], index: 0, kind: input, shape index: {}]
  %s1 = inlined_call_operand.vmem [shape: f32[8,128], index: 1, kind: input, shape index: {}]
  %s2 = inlined_call_operand.vmem [shape: f32[1,8,128], index: 2, kind: output, shape index: {}]
  %s3 = sld [smem:[#allocation0]]
  $region18: #{focal_loss.1} parent=0
    _
  %s5 = ssub.s32 1, %s3
  %s6 = scalar_select 0, %s5, %s3
  // Predicated region
  $region2: #{focal_loss.1} parent=0 // pred_check
    _
  $region3: #{focal_loss.1} parent=0 // pred_check_branch
    %8 = sbr.rel (0) target = $region5
  $region4: #{focal_loss.1} parent=0 // pred_region
    _
  $region5: #{focal_loss.1} parent=0 // pred_fallthru
    _
  // Predicated region
  $region6: #{focal_loss.1} parent=0 // pred_check
    _
  $region7: #{focal_loss.1} parent=0 // pred_check_branch
    %10 = sbr.rel (0) target = $region9
  $region8: #{focal_loss.1} parent=0 // pred_region
    _
  $region9: #{focal_loss.1} parent=0 // pred_fallthru
    _
  %v11 = vld [vmem:[%s0] sm:$0xff]
  %v12 = vld [vmem:[%s1] sm:$0xff]
  %v13 = vand.u32 2147483647, %v11
  %v14 = vsub.f32 0.0, %v13
  %v15 = vmul.f32 %v14, 1.442695
  %v16 = vpow.pop %v15
  %v17 = vmax.f32 %v11, 0.0
  %v18 = vmul.f32 %v11, %v12
  %v19 = vsub.f32 %v17, %v18
  %v20 = vadd.f32 %v16, 1.0
  %v21 = vlog2.pop %v20
  %v22 = vmul.f32 %v21, 0.6931472
  %v23 = vmul.f32 -0.5, %v16
  %v24 = vadd.f32 %v23, 1.0
  %v25 = vmul.f32 %v24, %v16
  %v26 = vand.u32 2147483647, %v16
  %vm27 = vcmp.lt.f32.partialorder %v26, 0.0004427343
  %v28 = vsel %vm27, %v25, %v22
  %v29 = vadd.f32 %v19, %v28
  %v30 = vadd.f32 %v16, 1.0
  %v31 = vrcp.pop %v30
  %v32 = vmul.f32 1.0, %v31
  %v33 = vmul.f32 %v16, %v32
  %vm34 = vcmp.ge.f32.partialorder %v11, 0.0
  %v35 = vsel %vm34, %v32, %v33
  %v36 = vsel %vm34, %v33, %v32
  %vm37 = vcmp.ge.f32.partialorder %v12, 0.5
  %v38 = vsel %vm37, %v36, %v35
  %v39 = vmul.f32 %v38, %v38
  %v40 = vmul.f32 %v39, %v29
  %v41 = vadd.f32 %v40, 0.0
  %42 = vst [vmem:[%s2] sm:$0xff] %v41
  // Predicated region
  $region10: #{focal_loss.1} parent=0 // pred_check
    _
  $region11: #{focal_loss.1} parent=0 // pred_check_branch
    %44 = sbr.rel (0) target = $region13
  $region12: #{focal_loss.1} parent=0 // pred_region
    _
  $region13: #{focal_loss.1} parent=0 // pred_fallthru
    _
  // Predicated region
  $region14: #{focal_loss.1} parent=0 // pred_check
    _
  $region15: #{focal_loss.1} parent=0 // pred_check_branch
    %46 = sbr.rel (0) target = $region17
  $region16: #{focal_loss.1} parent=0 // pred_region
    _
  $region17: #{focal_loss.1} parent=0 // pred_fallthru
    _

</llo_original>
